<compile_context>
chip_gen: v6e
topology: v6e:2x2x1
jax: 0.10.0
libtpu: 0.0.40
codegen_flags: <defaults>
</compile_context>

<pallas_src>
import functools

import jax
import jax.numpy as jnp
import numpy as np
from jax.experimental import pallas as pl
from jax.experimental.pallas import tpu as pltpu

EPS = 1e-5


# ----------------------------- kernel helpers ---------------------------------
def _bn_fold(y, gamma, beta, inv_m, eps):
    """Training-mode BN folded into one scale/shift; one stats pass (sum, sumsq).

    Note: E[y^2]-mean^2 can cancel for large-mean channels; fine at rtol 2e-2,
    switch to a shifted/two-pass variance when M-tiling (see TODO above)."""
    s1 = jnp.sum(y, axis=1, keepdims=True)            # (C, 1)  lane reduce (XLU)
    s2 = jnp.sum(y * y, axis=1, keepdims=True)        # (C, 1)
    mean = s1 * inv_m
    var = s2 * inv_m - mean * mean                    # biased variance
    scale = gamma * jax.lax.rsqrt(var + eps)          # rsqrt -> EUP (free slot)
    shift = beta - mean * scale
    return y * scale + shift                          # single fused scale/shift


# ------------------------------ Pallas kernel ----------------------------------
def _resblock_kernel(*refs, m, shifts, has_proj, eps):
    if has_proj:
        (xcol1_ref, w1_ref, g1_ref, b1_ref,
         w2s_ref, masks_ref, g2_ref, b2_ref,
         xs_ref, wt_ref, gt_ref, bt_ref, out_ref) = refs
    else:
        (xcol1_ref, w1_ref, g1_ref, b1_ref,
         w2s_ref, masks_ref, g2_ref, b2_ref,
         res_ref, out_ref) = refs

    inv_m = 1.0 / m

    # ---- conv1 (3x3, stride) as one MXU matmul: (Cout, 9*Cin) @ (9*Cin, M)
    y1 = jnp.dot(w1_ref[...], xcol1_ref[...], preferred_element_type=jnp.float32)
    y1 = _bn_fold(y1, g1_ref[...], b1_ref[...], inv_m, eps)
    y1 = jnp.maximum(y1, 0.0)                          # ReLU

    # ---- conv2 (3x3, stride 1, pad 1): 9 XLU lane-rolls + 1 mask multiply each,
    # stacked along the contraction axis, then ONE MXU matmul with K = 9*Cout.
    taps = []
    for t, shift in enumerate(shifts):
        shifted = y1 if shift == 0 else pltpu.roll(y1, shift, axis=1)
        taps.append(shifted * masks_ref[t])            # (Cout, M) * (1, M) border mask
    stacked = jnp.concatenate(taps, axis=0)            # (9*Cout, M) f32, tile-aligned
    stacked = stacked.astype(jnp.bfloat16)             # single cast for the MXU
    y2 = jnp.dot(w2s_ref[...], stacked, preferred_element_type=jnp.float32)
    y2 = _bn_fold(y2, g2_ref[...], b2_ref[...], inv_m, eps)

    # ---- shortcut: 1x1 conv + BN (projection) or identity
    if has_proj:
        ys = jnp.dot(wt_ref[...], xs_ref[...], preferred_element_type=jnp.float32)
        res = _bn_fold(ys, gt_ref[...], bt_ref[...], inv_m, eps)
    else:
        res = res_ref[...]

    out_ref[...] = (y2 + res).astype(out_ref.dtype)


# -------------------------------- JAX glue --------------------------------------
def _im2col_t(x_nhwc, ksize, stride, padding):
    """(N,H,W,C) -> transposed im2col (K = k*k*C, M = N*Ho*Wo); K ordered (kh, kw, ci)."""
    nb, h, w, c = x_nhwc.shape
    if padding:
        x_nhwc = jnp.pad(x_nhwc, ((0, 0), (padding, padding), (padding, padding), (0, 0)))
    ho = (h + 2 * padding - ksize) // stride + 1
    wo = (w + 2 * padding - ksize) // stride + 1
    cols = []
    for kh in range(ksize):
        for kw in range(ksize):
            cols.append(x_nhwc[:, kh:kh + ho * stride:stride, kw:kw + wo * stride:stride, :])
    xcol = jnp.concatenate(cols, axis=-1).reshape(nb * ho * wo, ksize * ksize * c)
    return xcol.T, (ho, wo)                            # (K, M)


def res_block_forward(x_nchw, params, *, ch_in, ch_out, stride):
    nb = x_nchw.shape[0]
    bf = jnp.bfloat16
    # NCHW -> NHWC and cast to bf16 BEFORE im2col / transpose (halves HBM traffic).
    x = jnp.transpose(x_nchw, (0, 2, 3, 1)).astype(bf)

    xcol1_t, (ho, wo) = _im2col_t(x, 3, stride, 1)     # (9*Cin, M) bf16
    m = nb * ho * wo

    # Compile-time constants: per-tap lane shifts and 0/1 border masks (numpy, folded).
    lane = np.arange(m)
    wo_i = lane % wo
    ho_i = (lane // wo) % ho
    masks_np = np.zeros((9, 1, m), np.float32)
    shifts = []
    for kh in range(3):
        for kw in range(3):
            dh, dw = kh - 1, kw - 1
            valid = ((ho_i + dh >= 0) & (ho_i + dh < ho) &
                     (wo_i + dw >= 0) & (wo_i + dw < wo))
            masks_np[kh * 3 + kw, 0, :] = valid.astype(np.float32)
            shifts.append((-(dh * wo + dw)) % m)       # shifted[:,i] = y[:,(i+off)%m]
    masks = jnp.asarray(masks_np)
    shifts = tuple(shifts)

    # Weights in the layouts the kernel expects, bf16 for the MXU (f32 accumulation).
    w1_t = jnp.transpose(params["conv1_w"], (0, 2, 3, 1)).reshape(ch_out, 9 * ch_in)
    w2s = jnp.transpose(params["conv2_w"], (0, 2, 3, 1)).reshape(ch_out, 9 * ch_out)
    # Conv biases are dropped: exactly cancelled by training-mode BN mean subtraction.

    def col(v):  # per-channel BN params as (C, 1) f32, broadcast along lanes
        return v.reshape(-1, 1).astype(jnp.float32)

    args = [xcol1_t, w1_t.astype(bf), col(params["bn1_g"]), col(params["bn1_b"]),
            w2s.astype(bf), masks, col(params["bn2_g"]), col(params["bn2_b"])]

    has_proj = ch_in != ch_out
    if has_proj:
        xs_t = x[:, ::stride, ::stride, :].reshape(m, ch_in).T                 # (Cin, M) bf16
        wt = params["convt_w"].reshape(ch_out, ch_in)
        args += [xs_t, wt.astype(bf), col(params["bnt_g"]), col(params["bnt_b"])]
    else:
        assert stride == 1, "identity shortcut requires stride == 1 (as in the PyTorch module)"
        # Keep the identity residual in f32 (it dominates the output numerically).
        args += [jnp.transpose(x_nchw, (0, 2, 3, 1)).reshape(m, ch_out).T.astype(jnp.float32)]

    kernel = functools.partial(_resblock_kernel, m=m, shifts=shifts,
                               has_proj=has_proj, eps=EPS)
    vmem = pl.BlockSpec(memory_space=pltpu.MemorySpace.VMEM)
    out_t = pl.pallas_call(
        kernel,
        out_shape=jax.ShapeDtypeStruct((ch_out, m), jnp.float32),  # lane-dense (Cout, M)
        in_specs=[vmem] * len(args),
        out_specs=vmem,
        compiler_params=pltpu.CompilerParams(vmem_limit_bytes=64 * 1024 * 1024),
    )(*args)

    out = out_t.reshape(ch_out, nb, ho, wo)
    return jnp.transpose(out, (1, 0, 2, 3))            # back to NCHW (module contract)


# ----------------------------- pure-JAX reference --------------------------------
def jax_ref(x, p, ch_in, ch_out, stride):
    def conv(x, w, b, s, pad):
        y = jax.lax.conv_general_dilated(
            x, w, (s, s), [(pad, pad), (pad, pad)],
            dimension_numbers=("NCHW", "OIHW", "NCHW"),
            precision=jax.lax.Precision.HIGHEST,
        )
        return y + b[None, :, None, None]

    def bn(x, g, b):
        mean = jnp.mean(x, axis=(0, 2, 3), keepdims=True)
        var = jnp.mean((x - mean) ** 2, axis=(0, 2, 3), keepdims=True)
        return (x - mean) * jax.lax.rsqrt(var + EPS) * g[None, :, None, None] + b[None, :, None, None]

    x1 = jax.nn.relu(bn(conv(x, p["conv1_w"], p["conv1_b"], stride, 1), p["bn1_g"], p["bn1_b"]))
    x2 = bn(conv(x1, p["conv2_w"], p["conv2_b"], 1, 1), p["bn2_g"], p["bn2_b"])
    if ch_in != ch_out:
        xc = bn(conv(x, p["convt_w"], p["convt_b"], stride, 0), p["bnt_g"], p["bnt_b"])
    else:
        xc = x
    return x2 + xc


# ------------------------------------ main ----------------------------------------
if __name__ == "__main__":
    ch_in, ch_out, stride = 4, 8, 2
    N, H, W = 2, 16, 16

    key = jax.random.PRNGKey(0)
    ks = jax.random.split(key, 13)
    params = {
        "conv1_w": 0.2 * jax.random.normal(ks[0], (ch_out, ch_in, 3, 3), jnp.float32),
        "conv1_b": 0.1 * jax.random.normal(ks[1], (ch_out,), jnp.float32),
        "bn1_g": 1.0 + 0.1 * jax.random.normal(ks[2], (ch_out,), jnp.float32),
        "bn1_b": 0.1 * jax.random.normal(ks[3], (ch_out,), jnp.float32),
        "conv2_w": 0.2 * jax.random.normal(ks[4], (ch_out, ch_out, 3, 3), jnp.float32),
        "conv2_b": 0.1 * jax.random.normal(ks[5], (ch_out,), jnp.float32),
        "bn2_g": 1.0 + 0.1 * jax.random.normal(ks[6], (ch_out,), jnp.float32),
        "bn2_b": 0.1 * jax.random.normal(ks[7], (ch_out,), jnp.float32),
        "convt_w": 0.2 * jax.random.normal(ks[8], (ch_out, ch_in, 1, 1), jnp.float32),
        "convt_b": 0.1 * jax.random.normal(ks[9], (ch_out,), jnp.float32),
        "bnt_g": 1.0 + 0.1 * jax.random.normal(ks[10], (ch_out,), jnp.float32),
        "bnt_b": 0.1 * jax.random.normal(ks[11], (ch_out,), jnp.float32),
    }
    x = jax.random.normal(ks[12], (N, ch_in, H, W), jnp.float32)

    fwd = jax.jit(
        functools.partial(res_block_forward, ch_in=ch_in, ch_out=ch_out, stride=stride)
    )
    out = fwd(x, params)
    out = jax.block_until_ready(out)

    ref = jax_ref(x, params, ch_in, ch_out, stride)
    np.testing.assert_allclose(np.asarray(out), np.asarray(ref), rtol=2e-2, atol=2e-2)
    assert out.shape == (N, ch_out, H // stride, W // stride)
    print("KERNEL_OK")
</pallas_src>

<mosaic_0001>
module attributes {stable_mosaic.version = 11 : i64} {
  func.func @_resblock_kernel(%arg0: memref<36x128xbf16, #tpu.memory_space<vmem>>, %arg1: memref<8x36xbf16, #tpu.memory_space<vmem>>, %arg2: memref<8x1xf32, #tpu.memory_space<vmem>>, %arg3: memref<8x1xf32, #tpu.memory_space<vmem>>, %arg4: memref<8x72xbf16, #tpu.memory_space<vmem>>, %arg5: memref<9x1x128xf32, #tpu.memory_space<vmem>>, %arg6: memref<8x1xf32, #tpu.memory_space<vmem>>, %arg7: memref<8x1xf32, #tpu.memory_space<vmem>>, %arg8: memref<4x128xbf16, #tpu.memory_space<vmem>>, %arg9: memref<8x4xbf16, #tpu.memory_space<vmem>>, %arg10: memref<8x1xf32, #tpu.memory_space<vmem>>, %arg11: memref<8x1xf32, #tpu.memory_space<vmem>>, %arg12: memref<8x128xf32, #tpu.memory_space<vmem>>) attributes {dimension_semantics = [], scalar_prefetch = 0 : i64, scratch_operands = 0 : i64, tpu.core_type = #tpu.core_type<tc>} {
    %c0 = arith.constant 0 : index
    %c0_0 = arith.constant 0 : index
    %0 = vector.load %arg1[%c0, %c0_0] : memref<8x36xbf16, #tpu.memory_space<vmem>>, vector<8x36xbf16>
    %c0_1 = arith.constant 0 : index
    %c0_2 = arith.constant 0 : index
    %1 = vector.load %arg0[%c0_1, %c0_2] : memref<36x128xbf16, #tpu.memory_space<vmem>>, vector<36x128xbf16>
    %cst = arith.constant dense<0.000000e+00> : vector<8x128xf32>
    %2 = tpu.matmul %0, %1, %cst {dimension_numbers = #tpu.dot_dimension_numbers<[1], [0], [0], [1], [0, 0, 1, 1], [], []>} : vector<8x36xbf16>, vector<36x128xbf16>, vector<8x128xf32> -> vector<8x128xf32>
    %c0_3 = arith.constant 0 : index
    %c0_4 = arith.constant 0 : index
    %3 = vector.load %arg2[%c0_3, %c0_4] : memref<8x1xf32, #tpu.memory_space<vmem>>, vector<8x1xf32>
    %c0_5 = arith.constant 0 : index
    %c0_6 = arith.constant 0 : index
    %4 = vector.load %arg3[%c0_5, %c0_6] : memref<8x1xf32, #tpu.memory_space<vmem>>, vector<8x1xf32>
    %cst_7 = arith.constant dense<0.000000e+00> : vector<8xf32>
    %5 = vector.multi_reduction <add>, %2, %cst_7 [1] : vector<8x128xf32> to vector<8xf32>
    %6 = vector.shape_cast %5 : vector<8xf32> to vector<8x1xf32>
    %7 = arith.mulf %2, %2 : vector<8x128xf32>
    %cst_8 = arith.constant dense<0.000000e+00> : vector<8xf32>
    %8 = vector.multi_reduction <add>, %7, %cst_8 [1] : vector<8x128xf32> to vector<8xf32>
    %9 = vector.shape_cast %8 : vector<8xf32> to vector<8x1xf32>
    %cst_9 = arith.constant 7.812500e-03 : f32
    %10 = vector.broadcast %cst_9 : f32 to vector<8x1xf32>
    %11 = arith.mulf %6, %10 : vector<8x1xf32>
    %cst_10 = arith.constant 7.812500e-03 : f32
    %12 = vector.broadcast %cst_10 : f32 to vector<8x1xf32>
    %13 = arith.mulf %9, %12 : vector<8x1xf32>
    %14 = arith.mulf %11, %11 : vector<8x1xf32>
    %15 = arith.subf %13, %14 : vector<8x1xf32>
    %cst_11 = arith.constant 9.99999974E-6 : f32
    %16 = vector.broadcast %cst_11 : f32 to vector<8x1xf32>
    %17 = arith.addf %15, %16 : vector<8x1xf32>
    %18 = math.rsqrt %17 : vector<8x1xf32>
    %19 = arith.mulf %3, %18 : vector<8x1xf32>
    %20 = arith.mulf %11, %19 : vector<8x1xf32>
    %21 = arith.subf %4, %20 : vector<8x1xf32>
    %22 = vector.broadcast %19 : vector<8x1xf32> to vector<8x128xf32>
    %23 = arith.mulf %2, %22 : vector<8x128xf32>
    %24 = vector.broadcast %21 : vector<8x1xf32> to vector<8x128xf32>
    %25 = arith.addf %23, %24 : vector<8x128xf32>
    %cst_12 = arith.constant 0.000000e+00 : f32
    %26 = vector.broadcast %cst_12 : f32 to vector<8x128xf32>
    %27 = arith.maximumf %25, %26 : vector<8x128xf32>
    %c9_i32 = arith.constant 9 : i32
    %28 = tpu.dynamic_rotate %27 by %c9_i32 dim 1 : vector<8x128xf32>, i32 -> vector<8x128xf32>
    %c0_13 = arith.constant 0 : index
    %c0_14 = arith.constant 0 : index
    %c0_15 = arith.constant 0 : index
    %29 = vector.load %arg5[%c0_13, %c0_14, %c0_15] : memref<9x1x128xf32, #tpu.memory_space<vmem>>, vector<1x1x128xf32>
    %30 = vector.shape_cast %29 : vector<1x1x128xf32> to vector<1x128xf32>
    %31 = vector.broadcast %30 : vector<1x128xf32> to vector<8x128xf32>
    %32 = arith.mulf %28, %31 : vector<8x128xf32>
    %c8_i32 = arith.constant 8 : i32
    %33 = tpu.dynamic_rotate %27 by %c8_i32 dim 1 : vector<8x128xf32>, i32 -> vector<8x128xf32>
    %c1 = arith.constant 1 : index
    %c0_16 = arith.constant 0 : index
    %c0_17 = arith.constant 0 : index
    %34 = vector.load %arg5[%c1, %c0_16, %c0_17] : memref<9x1x128xf32, #tpu.memory_space<vmem>>, vector<1x1x128xf32>
    %35 = vector.shape_cast %34 : vector<1x1x128xf32> to vector<1x128xf32>
    %36 = vector.broadcast %35 : vector<1x128xf32> to vector<8x128xf32>
    %37 = arith.mulf %33, %36 : vector<8x128xf32>
    %c7_i32 = arith.constant 7 : i32
    %38 = tpu.dynamic_rotate %27 by %c7_i32 dim 1 : vector<8x128xf32>, i32 -> vector<8x128xf32>
    %c2 = arith.constant 2 : index
    %c0_18 = arith.constant 0 : index
    %c0_19 = arith.constant 0 : index
    %39 = vector.load %arg5[%c2, %c0_18, %c0_19] : memref<9x1x128xf32, #tpu.memory_space<vmem>>, vector<1x1x128xf32>
    %40 = vector.shape_cast %39 : vector<1x1x128xf32> to vector<1x128xf32>
    %41 = vector.broadcast %40 : vector<1x128xf32> to vector<8x128xf32>
    %42 = arith.mulf %38, %41 : vector<8x128xf32>
    %c1_i32 = arith.constant 1 : i32
    %43 = tpu.dynamic_rotate %27 by %c1_i32 dim 1 : vector<8x128xf32>, i32 -> vector<8x128xf32>
    %c3 = arith.constant 3 : index
    %c0_20 = arith.constant 0 : index
    %c0_21 = arith.constant 0 : index
    %44 = vector.load %arg5[%c3, %c0_20, %c0_21] : memref<9x1x128xf32, #tpu.memory_space<vmem>>, vector<1x1x128xf32>
    %45 = vector.shape_cast %44 : vector<1x1x128xf32> to vector<1x128xf32>
    %46 = vector.broadcast %45 : vector<1x128xf32> to vector<8x128xf32>
    %47 = arith.mulf %43, %46 : vector<8x128xf32>
    %c4 = arith.constant 4 : index
    %c0_22 = arith.constant 0 : index
    %c0_23 = arith.constant 0 : index
    %48 = vector.load %arg5[%c4, %c0_22, %c0_23] : memref<9x1x128xf32, #tpu.memory_space<vmem>>, vector<1x1x128xf32>
    %49 = vector.shape_cast %48 : vector<1x1x128xf32> to vector<1x128xf32>
    %50 = vector.broadcast %49 : vector<1x128xf32> to vector<8x128xf32>
    %51 = arith.mulf %27, %50 : vector<8x128xf32>
    %c127_i32 = arith.constant 127 : i32
    %52 = tpu.dynamic_rotate %27 by %c127_i32 dim 1 : vector<8x128xf32>, i32 -> vector<8x128xf32>
    %c5 = arith.constant 5 : index
    %c0_24 = arith.constant 0 : index
    %c0_25 = arith.constant 0 : index
    %53 = vector.load %arg5[%c5, %c0_24, %c0_25] : memref<9x1x128xf32, #tpu.memory_space<vmem>>, vector<1x1x128xf32>
    %54 = vector.shape_cast %53 : vector<1x1x128xf32> to vector<1x128xf32>
    %55 = vector.broadcast %54 : vector<1x128xf32> to vector<8x128xf32>
    %56 = arith.mulf %52, %55 : vector<8x128xf32>
    %c121_i32 = arith.constant 121 : i32
    %57 = tpu.dynamic_rotate %27 by %c121_i32 dim 1 : vector<8x128xf32>, i32 -> vector<8x128xf32>
    %c6 = arith.constant 6 : index
    %c0_26 = arith.constant 0 : index
    %c0_27 = arith.constant 0 : index
    %58 = vector.load %arg5[%c6, %c0_26, %c0_27] : memref<9x1x128xf32, #tpu.memory_space<vmem>>, vector<1x1x128xf32>
    %59 = vector.shape_cast %58 : vector<1x1x128xf32> to vector<1x128xf32>
    %60 = vector.broadcast %59 : vector<1x128xf32> to vector<8x128xf32>
    %61 = arith.mulf %57, %60 : vector<8x128xf32>
    %c120_i32 = arith.constant 120 : i32
    %62 = tpu.dynamic_rotate %27 by %c120_i32 dim 1 : vector<8x128xf32>, i32 -> vector<8x128xf32>
    %c7 = arith.constant 7 : index
    %c0_28 = arith.constant 0 : index
    %c0_29 = arith.constant 0 : index
    %63 = vector.load %arg5[%c7, %c0_28, %c0_29] : memref<9x1x128xf32, #tpu.memory_space<vmem>>, vector<1x1x128xf32>
    %64 = vector.shape_cast %63 : vector<1x1x128xf32> to vector<1x128xf32>
    %65 = vector.broadcast %64 : vector<1x128xf32> to vector<8x128xf32>
    %66 = arith.mulf %62, %65 : vector<8x128xf32>
    %c119_i32 = arith.constant 119 : i32
    %67 = tpu.dynamic_rotate %27 by %c119_i32 dim 1 : vector<8x128xf32>, i32 -> vector<8x128xf32>
    %c8 = arith.constant 8 : index
    %c0_30 = arith.constant 0 : index
    %c0_31 = arith.constant 0 : index
    %68 = vector.load %arg5[%c8, %c0_30, %c0_31] : memref<9x1x128xf32, #tpu.memory_space<vmem>>, vector<1x1x128xf32>
    %69 = vector.shape_cast %68 : vector<1x1x128xf32> to vector<1x128xf32>
    %70 = vector.broadcast %69 : vector<1x128xf32> to vector<8x128xf32>
    %71 = arith.mulf %67, %70 : vector<8x128xf32>
    %72 = tpu.concatenate %32, %37, %42, %47, %51, %56, %61, %66, %71 in 0 : vector<8x128xf32>, vector<8x128xf32>, vector<8x128xf32>, vector<8x128xf32>, vector<8x128xf32>, vector<8x128xf32>, vector<8x128xf32>, vector<8x128xf32>, vector<8x128xf32> -> vector<72x128xf32>
    %73 = arith.truncf %72 : vector<72x128xf32> to vector<72x128xbf16>
    %c0_32 = arith.constant 0 : index
    %c0_33 = arith.constant 0 : index
    %74 = vector.load %arg4[%c0_32, %c0_33] : memref<8x72xbf16, #tpu.memory_space<vmem>>, vector<8x72xbf16>
    %cst_34 = arith.constant dense<0.000000e+00> : vector<8x128xf32>
    %75 = tpu.matmul %74, %73, %cst_34 {dimension_numbers = #tpu.dot_dimension_numbers<[1], [0], [0], [1], [0, 0, 1, 1], [], []>} : vector<8x72xbf16>, vector<72x128xbf16>, vector<8x128xf32> -> vector<8x128xf32>
    %c0_35 = arith.constant 0 : index
    %c0_36 = arith.constant 0 : index
    %76 = vector.load %arg6[%c0_35, %c0_36] : memref<8x1xf32, #tpu.memory_space<vmem>>, vector<8x1xf32>
    %c0_37 = arith.constant 0 : index
    %c0_38 = arith.constant 0 : index
    %77 = vector.load %arg7[%c0_37, %c0_38] : memref<8x1xf32, #tpu.memory_space<vmem>>, vector<8x1xf32>
    %cst_39 = arith.constant dense<0.000000e+00> : vector<8xf32>
    %78 = vector.multi_reduction <add>, %75, %cst_39 [1] : vector<8x128xf32> to vector<8xf32>
    %79 = vector.shape_cast %78 : vector<8xf32> to vector<8x1xf32>
    %80 = arith.mulf %75, %75 : vector<8x128xf32>
    %cst_40 = arith.constant dense<0.000000e+00> : vector<8xf32>
    %81 = vector.multi_reduction <add>, %80, %cst_40 [1] : vector<8x128xf32> to vector<8xf32>
    %82 = vector.shape_cast %81 : vector<8xf32> to vector<8x1xf32>
    %cst_41 = arith.constant 7.812500e-03 : f32
    %83 = vector.broadcast %cst_41 : f32 to vector<8x1xf32>
    %84 = arith.mulf %79, %83 : vector<8x1xf32>
    %cst_42 = arith.constant 7.812500e-03 : f32
    %85 = vector.broadcast %cst_42 : f32 to vector<8x1xf32>
    %86 = arith.mulf %82, %85 : vector<8x1xf32>
    %87 = arith.mulf %84, %84 : vector<8x1xf32>
    %88 = arith.subf %86, %87 : vector<8x1xf32>
    %cst_43 = arith.constant 9.99999974E-6 : f32
    %89 = vector.broadcast %cst_43 : f32 to vector<8x1xf32>
    %90 = arith.addf %88, %89 : vector<8x1xf32>
    %91 = math.rsqrt %90 : vector<8x1xf32>
    %92 = arith.mulf %76, %91 : vector<8x1xf32>
    %93 = arith.mulf %84, %92 : vector<8x1xf32>
    %94 = arith.subf %77, %93 : vector<8x1xf32>
    %95 = vector.broadcast %92 : vector<8x1xf32> to vector<8x128xf32>
    %96 = arith.mulf %75, %95 : vector<8x128xf32>
    %97 = vector.broadcast %94 : vector<8x1xf32> to vector<8x128xf32>
    %98 = arith.addf %96, %97 : vector<8x128xf32>
    %c0_44 = arith.constant 0 : index
    %c0_45 = arith.constant 0 : index
    %99 = vector.load %arg9[%c0_44, %c0_45] : memref<8x4xbf16, #tpu.memory_space<vmem>>, vector<8x4xbf16>
    %c0_46 = arith.constant 0 : index
    %c0_47 = arith.constant 0 : index
    %100 = vector.load %arg8[%c0_46, %c0_47] : memref<4x128xbf16, #tpu.memory_space<vmem>>, vector<4x128xbf16>
    %cst_48 = arith.constant dense<0.000000e+00> : vector<8x128xf32>
    %101 = tpu.matmul %99, %100, %cst_48 {dimension_numbers = #tpu.dot_dimension_numbers<[1], [0], [0], [1], [0, 0, 1, 1], [], []>} : vector<8x4xbf16>, vector<4x128xbf16>, vector<8x128xf32> -> vector<8x128xf32>
    %c0_49 = arith.constant 0 : index
    %c0_50 = arith.constant 0 : index
    %102 = vector.load %arg10[%c0_49, %c0_50] : memref<8x1xf32, #tpu.memory_space<vmem>>, vector<8x1xf32>
    %c0_51 = arith.constant 0 : index
    %c0_52 = arith.constant 0 : index
    %103 = vector.load %arg11[%c0_51, %c0_52] : memref<8x1xf32, #tpu.memory_space<vmem>>, vector<8x1xf32>
    %cst_53 = arith.constant dense<0.000000e+00> : vector<8xf32>
    %104 = vector.multi_reduction <add>, %101, %cst_53 [1] : vector<8x128xf32> to vector<8xf32>
    %105 = vector.shape_cast %104 : vector<8xf32> to vector<8x1xf32>
    %106 = arith.mulf %101, %101 : vector<8x128xf32>
    %cst_54 = arith.constant dense<0.000000e+00> : vector<8xf32>
    %107 = vector.multi_reduction <add>, %106, %cst_54 [1] : vector<8x128xf32> to vector<8xf32>
    %108 = vector.shape_cast %107 : vector<8xf32> to vector<8x1xf32>
    %cst_55 = arith.constant 7.812500e-03 : f32
    %109 = vector.broadcast %cst_55 : f32 to vector<8x1xf32>
    %110 = arith.mulf %105, %109 : vector<8x1xf32>
    %cst_56 = arith.constant 7.812500e-03 : f32
    %111 = vector.broadcast %cst_56 : f32 to vector<8x1xf32>
    %112 = arith.mulf %108, %111 : vector<8x1xf32>
    %113 = arith.mulf %110, %110 : vector<8x1xf32>
    %114 = arith.subf %112, %113 : vector<8x1xf32>
    %cst_57 = arith.constant 9.99999974E-6 : f32
    %115 = vector.broadcast %cst_57 : f32 to vector<8x1xf32>
    %116 = arith.addf %114, %115 : vector<8x1xf32>
    %117 = math.rsqrt %116 : vector<8x1xf32>
    %118 = arith.mulf %102, %117 : vector<8x1xf32>
    %119 = arith.mulf %110, %118 : vector<8x1xf32>
    %120 = arith.subf %103, %119 : vector<8x1xf32>
    %121 = vector.broadcast %118 : vector<8x1xf32> to vector<8x128xf32>
    %122 = arith.mulf %101, %121 : vector<8x128xf32>
    %123 = vector.broadcast %120 : vector<8x1xf32> to vector<8x128xf32>
    %124 = arith.addf %122, %123 : vector<8x128xf32>
    %125 = arith.addf %98, %124 : vector<8x128xf32>
    %c0_58 = arith.constant 0 : index
    %c0_59 = arith.constant 0 : index
    %126 = vector.load %arg12[%c0_58, %c0_59] : memref<8x128xf32, #tpu.memory_space<vmem>>, vector<8x128xf32>
    tpu.vector_store %arg12[%c0_58, %c0_59], %125 {strides = array<i32>} : memref<8x128xf32, #tpu.memory_space<vmem>>, vector<8x128xf32>,
    return
  }
}

</mosaic_0001>

<llo_original>
// kernel: res_block_forward.1
$region0: #{res_block_forward.1}
  #allocation0 [shape = 'u32[]', space=smem, size = 0x4, offset = 0x4, fixed_abs, tag = 'smem constant byte address 0x4 - core index']
  #allocation1 [shape = 'u32[144,128]{1,0:T(1,128)}', space=vmem, size = 0x12000, scoped, tag = 'internal scratch']
  %s0 = inlined_call_operand.vmem [shape: bf16[36,128], index: 0, kind: input, shape index: {}]
  %s1 = inlined_call_operand.vmem [shape: bf16[8,36], index: 1, kind: input, shape index: {}]
  %s2 = inlined_call_operand.vmem [shape: f32[8,1], index: 2, kind: input, shape index: {}]
  %s3 = inlined_call_operand.vmem [shape: f32[8,1], index: 3, kind: input, shape index: {}]
  %s4 = inlined_call_operand.vmem [shape: bf16[8,72], index: 4, kind: input, shape index: {}]
  %s5 = inlined_call_operand.vmem [shape: f32[9,1,128], index: 5, kind: input, shape index: {}]
  %s6 = inlined_call_operand.vmem [shape: f32[8,1], index: 6, kind: input, shape index: {}]
  %s7 = inlined_call_operand.vmem [shape: f32[8,1], index: 7, kind: input, shape index: {}]
  %s8 = inlined_call_operand.vmem [shape: bf16[4,128], index: 8, kind: input, shape index: {}]
  %s9 = inlined_call_operand.vmem [shape: bf16[8,4], index: 9, kind: input, shape index: {}]
  %s10 = inlined_call_operand.vmem [shape: f32[8,1], index: 10, kind: input, shape index: {}]
  %s11 = inlined_call_operand.vmem [shape: f32[8,1], index: 11, kind: input, shape index: {}]
  %s12 = inlined_call_operand.vmem [shape: f32[8,128], index: 12, kind: output, shape index: {}]
  %s13 = sld [smem:[#allocation0]]
  $region58: #{res_block_forward.1} parent=0
    _
  %s15 = ssub.s32 1, %s13
  %s16 = scalar_select 0, %s15, %s13
  // Predicated region
  $region2: #{res_block_forward.1} parent=0 // pred_check
    _
  $region3: #{res_block_forward.1} parent=0 // pred_check_branch
    %18 = sbr.rel (0) target = $region5
  $region4: #{res_block_forward.1} parent=0 // pred_region
    _
  $region5: #{res_block_forward.1} parent=0 // pred_fallthru
    _
  // Predicated region
  $region6: #{res_block_forward.1} parent=0 // pred_check
    _
  $region7: #{res_block_forward.1} parent=0 // pred_check_branch
    %20 = sbr.rel (0) target = $region9
  $region8: #{res_block_forward.1} parent=0 // pred_region
    _
  $region9: #{res_block_forward.1} parent=0 // pred_fallthru
    _
  // Predicated region
  $region10: #{res_block_forward.1} parent=0 // pred_check
    _
  $region11: #{res_block_forward.1} parent=0 // pred_check_branch
    %22 = sbr.rel (0) target = $region13
  $region12: #{res_block_forward.1} parent=0 // pred_region
    _
  $region13: #{res_block_forward.1} parent=0 // pred_fallthru
    _
  // Predicated region
  $region14: #{res_block_forward.1} parent=0 // pred_check
    _
  $region15: #{res_block_forward.1} parent=0 // pred_check_branch
    %24 = sbr.rel (0) target = $region17
  $region16: #{res_block_forward.1} parent=0 // pred_region
    _
  $region17: #{res_block_forward.1} parent=0 // pred_fallthru
    _
  // Predicated region
  $region18: #{res_block_forward.1} parent=0 // pred_check
    _
  $region19: #{res_block_forward.1} parent=0 // pred_check_branch
    %26 = sbr.rel (0) target = $region21
  $region20: #{res_block_forward.1} parent=0 // pred_region
    _
  $region21: #{res_block_forward.1} parent=0 // pred_fallthru
    _
  // Predicated region
  $region22: #{res_block_forward.1} parent=0 // pred_check
    _
  $region23: #{res_block_forward.1} parent=0 // pred_check_branch
    %28 = sbr.rel (0) target = $region25
  $region24: #{res_block_forward.1} parent=0 // pred_region
    _
  $region25: #{res_block_forward.1} parent=0 // pred_fallthru
    _
  // Predicated region
  $region26: #{res_block_forward.1} parent=0 // pred_check
    _
  $region27: #{res_block_forward.1} parent=0 // pred_check_branch
    %30 = sbr.rel (0) target = $region29
  $region28: #{res_block_forward.1} parent=0 // pred_region
    _
  $region29: #{res_block_forward.1} parent=0 // pred_fallthru
    _
  // Predicated region
  $region30: #{res_block_forward.1} parent=0 // pred_check
    _
  $region31: #{res_block_forward.1} parent=0 // pred_check_branch
    %32 = sbr.rel (0) target = $region33
  $region32: #{res_block_forward.1} parent=0 // pred_region
    _
  $region33: #{res_block_forward.1} parent=0 // pred_fallthru
    _
  // Predicated region
  $region34: #{res_block_forward.1} parent=0 // pred_check
    _
  $region35: #{res_block_forward.1} parent=0 // pred_check_branch
    %34 = sbr.rel (0) target = $region37
  $region36: #{res_block_forward.1} parent=0 // pred_region
    _
  $region37: #{res_block_forward.1} parent=0 // pred_fallthru
    _
  // Predicated region
  $region38: #{res_block_forward.1} parent=0 // pred_check
    _
  $region39: #{res_block_forward.1} parent=0 // pred_check_branch
    %36 = sbr.rel (0) target = $region41
  $region40: #{res_block_forward.1} parent=0 // pred_region
    _
  $region41: #{res_block_forward.1} parent=0 // pred_fallthru
    _
  // Predicated region
  $region42: #{res_block_forward.1} parent=0 // pred_check
    _
  $region43: #{res_block_forward.1} parent=0 // pred_check_branch
    %38 = sbr.rel (0) target = $region45
  $region44: #{res_block_forward.1} parent=0 // pred_region
    _
  $region45: #{res_block_forward.1} parent=0 // pred_fallthru
    _
  // Predicated region
  $region46: #{res_block_forward.1} parent=0 // pred_check
    _
  $region47: #{res_block_forward.1} parent=0 // pred_check_branch
    %40 = sbr.rel (0) target = $region49
  $region48: #{res_block_forward.1} parent=0 // pred_region
    _
  $region49: #{res_block_forward.1} parent=0 // pred_fallthru
    _
  %v42 = vld [vmem:[%s1] sm:$0xf]
  %v43 = vld [vmem:[%s0] sm:$0xf]
  %v44 = vld [vmem:[%s0 + $0x4] sm:$0xf]
  %v45 = vld [vmem:[%s0 + $0x8] sm:$0xf]
  %v46 = vld [vmem:[%s0 + $0xc] sm:$0xf]
  %v47 = vld [vmem:[%s0 + $0x10] sm:$0x3]
  %v53 = vunpack.c.l.b16 %v43
  %v54 = vunpack.c.l.b16 %v44
  %v55 = vunpack.c.l.b16 %v45
  %v56 = vunpack.c.l.b16 %v46
  %v57 = vunpack.c.l.b16 %v47
  %v58 = vpack.c.b16 %v54, %v53
  %v59 = vpack.c.b16 %v56, %v55
  %v60 = vpack.c.b16 %v57, %v57
  %vm63 = vcmask 293888
  %v65 = vsel %vm63, %v42, 0
  %vm67 = vcmask 1041408
  %v69 = vsel %vm67, %v60, 0
  %71 = vmatprep.subr.bf16.mxu0 0
  %72 = vmatpush1.bf16.msra.mxu0 0
  %73 = vmatprep.subr.bf16.mxu0 0
  %74 = vmatpush1.bf16.msra.mxu0 0
  %75 = vmatprep.subr.bf16.mxu0 0
  %76 = vmatpush1.bf16.msra.mxu0 0
  %77 = vmatprep.subr.bf16.mxu0 0
  %78 = vmatpush1.bf16.msra.mxu0 0
  %79 = vmatprep.subr.bf16.mxu0 0
  %80 = vmatpush1.bf16.msra.mxu0 0
  %81 = vmatprep.subr.bf16.mxu0 0
  %82 = vmatpush1.bf16.msra.mxu0 %v69
  %83 = vmatprep.subr.bf16.mxu0 0
  %84 = vmatpush1.bf16.msra.mxu0 %v59
  %85 = vmatprep.subr.bf16.mxu0 0
  %86 = vmatpush1.bf16.msra.mxu0 %v58
  %87 = vmatprep.subr.bf16.mxu0 0
  %88 = vmatpush2.bf16.msra.mxu0 0
  %89 = vmatprep.subr.bf16.mxu0 0
  %90 = vmatpush2.bf16.msra.mxu0 0
  %91 = vmatprep.subr.bf16.mxu0 0
  %92 = vmatpush2.bf16.msra.mxu0 0
  %93 = vmatprep.subr.bf16.mxu0 0
  %94 = vmatpush2.bf16.msra.mxu0 0
  %95 = vmatprep.subr.bf16.mxu0 0
  %96 = vmatpush2.bf16.msra.mxu0 0
  %97 = vmatprep.subr.bf16.mxu0 0
  %98 = vmatpush2.bf16.msra.mxu0 0
  %99 = vmatprep.subr.bf16.mxu0 0
  %100 = vmatpush2.bf16.msra.mxu0 0
  %101 = vmatprep.subr.bf16.mxu0 0
  %102 = vmatpush2.bf16.msra.mxu0 0
  %103 = vmatprep.mubr.bf16.mxu0 0
  %104 = vmatmul.mubr.bf16.gmra.mxu0 %v65
  %v105 = vpop.f32.mrf.mxu0
  %v106 = vadd.f32 0.0, %v105
  %v107 = vpop.f32.mrf.mxu0
  %v108 = vpop.f32.mrf.mxu0
  %v109 = vpop.f32.mrf.mxu0
  %110 = vdwg.mxu0
  %v111 = vld [vmem:[%s2] sm:$0xff]
  %v112 = vld [vmem:[%s3] sm:$0xff]
  %113 = vadd.xlane.f32.xlu0 %v106
  %v114 = vpop.xlane.xlu0 %113
  %v115 = vmul.f32 %v106, %v106
  %116 = vadd.xlane.f32.xlu0 %v115
  %v117 = vpop.xlane.xlu0 %116
  %v118 = vmul.f32 %v114, 0.0078125
  %v119 = vmul.f32 %v117, 0.0078125
  %v120 = vmul.f32 %v118, %v118
  %v121 = vsub.f32 %v119, %v120
  %v122 = vadd.f32 %v121, 1e-05
  %v123 = vrsqrt.pop %v122
  %v124 = vmul.f32 %v111, %v123
  %v125 = vmul.f32 %v118, %v124
  %v126 = vsub.f32 %v112, %v125
  %128 = vset.pattern.permute.xlu0 0
  %129 = vperm.xlu0 %128, %v124
  %v130 = vpop.permute.xlu0 %129
  %v132 = vmul.f32 %v106, %v130
  %134 = vset.pattern.permute.xlu0 0
  %135 = vperm.xlu0 %134, %v126
  %v136 = vpop.permute.xlu0 %135
  %v138 = vadd.f32 %v132, %v136
  %v139 = vmax.f32 %v138, 0.0
  %140 = vrot.lane.b32.xlu0 %v139, 9
  %v141 = vpop.permute.xlu0 %140
  %v142 = vld [vmem:[%s5] sm:$0x1]
  %v144 = vlaneseq
  %v145 = vshrl.u32 %v144, 7
  %v146 = vsub.s32 0, %v145
  %v147 = vrot.slane %v142, %v146
  %v149 = vmul.f32 %v141, %v147
  %150 = vrot.lane.b32.xlu0 %v139, 8
  %v151 = vpop.permute.xlu0 %150
  %s152 = scalar_lea.vmem %s5, 1
  %v153 = vld [vmem:[%s152] sm:$0x1]
  %v155 = vlaneseq
  %v156 = vshrl.u32 %v155, 7
  %v157 = vsub.s32 0, %v156
  %v158 = vrot.slane %v153, %v157
  %v160 = vmul.f32 %v151, %v158
  %161 = vrot.lane.b32.xlu0 %v139, 7
  %v162 = vpop.permute.xlu0 %161
  %s163 = scalar_lea.vmem %s5, 2
  %v164 = vld [vmem:[%s163] sm:$0x1]
  %v166 = vlaneseq
  %v167 = vshrl.u32 %v166, 7
  %v168 = vsub.s32 0, %v167
  %v169 = vrot.slane %v164, %v168
  %v171 = vmul.f32 %v162, %v169
  %172 = vrot.lane.b32.xlu0 %v139, 1
  %v173 = vpop.permute.xlu0 %172
  %s174 = scalar_lea.vmem %s5, 3
  %v175 = vld [vmem:[%s174] sm:$0x1]
  %v177 = vlaneseq
  %v178 = vshrl.u32 %v177, 7
  %v179 = vsub.s32 0, %v178
  %v180 = vrot.slane %v175, %v179
  %v182 = vmul.f32 %v173, %v180
  %s183 = scalar_lea.vmem %s5, 4
  %v184 = vld [vmem:[%s183] sm:$0x1]
  %v186 = vlaneseq
  %v187 = vshrl.u32 %v186, 7
  %v188 = vsub.s32 0, %v187
  %v189 = vrot.slane %v184, %v188
  %v191 = vmul.f32 %v139, %v189
  %192 = vrot.lane.b32.xlu0 %v139, 127
  %v193 = vpop.permute.xlu0 %192
  %s194 = scalar_lea.vmem %s5, 5
  %v195 = vld [vmem:[%s194] sm:$0x1]
  %v197 = vlaneseq
  %v198 = vshrl.u32 %v197, 7
  %v199 = vsub.s32 0, %v198
  %v200 = vrot.slane %v195, %v199
  %v202 = vmul.f32 %v193, %v200
  %203 = vrot.lane.b32.xlu0 %v139, 121
  %v204 = vpop.permute.xlu0 %203
  %s205 = scalar_lea.vmem %s5, 6
  %v206 = vld [vmem:[%s205] sm:$0x1]
  %v208 = vlaneseq
  %v209 = vshrl.u32 %v208, 7
  %v210 = vsub.s32 0, %v209
  %v211 = vrot.slane %v206, %v210
  %v213 = vmul.f32 %v204, %v211
  %214 = vrot.lane.b32.xlu0 %v139, 120
  %v215 = vpop.permute.xlu0 %214
  %s216 = scalar_lea.vmem %s5, 7
  %v217 = vld [vmem:[%s216] sm:$0x1]
  %v219 = vlaneseq
  %v220 = vshrl.u32 %v219, 7
  %v221 = vsub.s32 0, %v220
  %v222 = vrot.slane %v217, %v221
  %v224 = vmul.f32 %v215, %v222
  %225 = vrot.lane.b32.xlu0 %v139, 119
  %v226 = vpop.permute.xlu0 %225
  %s227 = scalar_lea.vmem %s5, 8
  %v228 = vld [vmem:[%s227] sm:$0x1]
  %v230 = vlaneseq
  %v231 = vshrl.u32 %v230, 7
  %v232 = vsub.s32 0, %v231
  %v233 = vrot.slane %v228, %v232
  %v235 = vmul.f32 %v226, %v233
  %v236 = vpack.c.bf16 %v160, %v149
  %v237 = vpack.c.bf16 %v182, %v171
  %v238 = vpack.c.bf16 %v202, %v191
  %v239 = vpack.c.bf16 %v224, %v213
  %v240 = vpack.c.bf16 %v235, %v235
  %v241 = vld [vmem:[%s4] sm:$0xf]
  %vm242 = vcmask 588800
  %v244 = vsel %vm242, %v241, 0
  %vm246 = vcmask 1043456
  %v248 = vsel %vm246, %v240, 0
  %250 = vmatprep.subr.bf16.mxu0 0
  %251 = vmatpush1.bf16.msra.mxu0 0
  %252 = vmatprep.subr.bf16.mxu0 0
  %253 = vmatpush1.bf16.msra.mxu0 0
  %254 = vmatprep.subr.bf16.mxu0 0
  %255 = vmatpush1.bf16.msra.mxu0 0
  %256 = vmatprep.subr.bf16.mxu0 0
  %257 = vmatpush1.bf16.msra.mxu0 %v248
  %258 = vmatprep.subr.bf16.mxu0 0
  %259 = vmatpush1.bf16.msra.mxu0 %v239
  %260 = vmatprep.subr.bf16.mxu0 0
  %261 = vmatpush1.bf16.msra.mxu0 %v238
  %262 = vmatprep.subr.bf16.mxu0 0
  %263 = vmatpush1.bf16.msra.mxu0 %v237
  %264 = vmatprep.subr.bf16.mxu0 0
  %265 = vmatpush1.bf16.msra.mxu0 %v236
  %266 = vmatprep.subr.bf16.mxu0 0
  %267 = vmatpush2.bf16.msra.mxu0 0
  %268 = vmatprep.subr.bf16.mxu0 0
  %269 = vmatpush2.bf16.msra.mxu0 0
  %270 = vmatprep.subr.bf16.mxu0 0
  %271 = vmatpush2.bf16.msra.mxu0 0
  %272 = vmatprep.subr.bf16.mxu0 0
  %273 = vmatpush2.bf16.msra.mxu0 0
  %274 = vmatprep.subr.bf16.mxu0 0
  %275 = vmatpush2.bf16.msra.mxu0 0
  %276 = vmatprep.subr.bf16.mxu0 0
  %277 = vmatpush2.bf16.msra.mxu0 0
  %278 = vmatprep.subr.bf16.mxu0 0
  %279 = vmatpush2.bf16.msra.mxu0 0
  %280 = vmatprep.subr.bf16.mxu0 0
  %281 = vmatpush2.bf16.msra.mxu0 0
  %282 = vmatprep.mubr.bf16.mxu0 0
  %283 = vmatmul.mubr.bf16.gmra.mxu0 %v244
  %v284 = vpop.f32.mrf.mxu0
  %v285 = vadd.f32 0.0, %v284
  %v286 = vpop.f32.mrf.mxu0
  %v287 = vpop.f32.mrf.mxu0
  %v288 = vpop.f32.mrf.mxu0
  %289 = vdwg.mxu0
  %v290 = vld [vmem:[%s6] sm:$0xff]
  %v291 = vld [vmem:[%s7] sm:$0xff]
  %292 = vadd.xlane.f32.xlu0 %v285
  %v293 = vpop.xlane.xlu0 %292
  %v294 = vmul.f32 %v285, %v285
  %295 = vadd.xlane.f32.xlu0 %v294
  %v296 = vpop.xlane.xlu0 %295
  %v297 = vmul.f32 %v293, 0.0078125
  %v298 = vmul.f32 %v296, 0.0078125
  %v299 = vmul.f32 %v297, %v297
  %v300 = vsub.f32 %v298, %v299
  %v301 = vadd.f32 %v300, 1e-05
  %v302 = vrsqrt.pop %v301
  %v303 = vmul.f32 %v290, %v302
  %v304 = vmul.f32 %v297, %v303
  %v305 = vsub.f32 %v291, %v304
  %307 = vset.pattern.permute.xlu0 0
  %308 = vperm.xlu0 %307, %v303
  %v309 = vpop.permute.xlu0 %308
  %v311 = vmul.f32 %v285, %v309
  %313 = vset.pattern.permute.xlu0 0
  %314 = vperm.xlu0 %313, %v305
  %v315 = vpop.permute.xlu0 %314
  %v317 = vadd.f32 %v311, %v315
  %v318 = vld [vmem:[%s9] sm:$0xf]
  %v319 = vld [vmem:[%s8] sm:$0x3]
  %vm320 = vcmask 31744
  %v322 = vsel %vm320, %v318, 0
  %v325 = vsel %vm67, %v319, 0
  %327 = vmatprep.subr.bf16.mxu0 0
  %328 = vmatpush1.bf16.msra.mxu0 0
  %329 = vmatprep.subr.bf16.mxu0 0
  %330 = vmatpush1.bf16.msra.mxu0 0
  %331 = vmatprep.subr.bf16.mxu0 0
  %332 = vmatpush1.bf16.msra.mxu0 0
  %333 = vmatprep.subr.bf16.mxu0 0
  %334 = vmatpush1.bf16.msra.mxu0 0
  %335 = vmatprep.subr.bf16.mxu0 0
  %336 = vmatpush1.bf16.msra.mxu0 0
  %337 = vmatprep.subr.bf16.mxu0 0
  %338 = vmatpush1.bf16.msra.mxu0 0
  %339 = vmatprep.subr.bf16.mxu0 0
  %340 = vmatpush1.bf16.msra.mxu0 0
  %341 = vmatprep.subr.bf16.mxu0 0
  %342 = vmatpush1.bf16.msra.mxu0 %v325
  %343 = vmatprep.subr.bf16.mxu0 0
  %344 = vmatpush2.bf16.msra.mxu0 0
  %345 = vmatprep.subr.bf16.mxu0 0
  %346 = vmatpush2.bf16.msra.mxu0 0
  %347 = vmatprep.subr.bf16.mxu0 0
  %348 = vmatpush2.bf16.msra.mxu0 0
  %349 = vmatprep.subr.bf16.mxu0 0
  %350 = vmatpush2.bf16.msra.mxu0 0
  %351 = vmatprep.subr.bf16.mxu0 0
  %352 = vmatpush2.bf16.msra.mxu0 0
  %353 = vmatprep.subr.bf16.mxu0 0
  %354 = vmatpush2.bf16.msra.mxu0 0
  %355 = vmatprep.subr.bf16.mxu0 0
  %356 = vmatpush2.bf16.msra.mxu0 0
  %357 = vmatprep.subr.bf16.mxu0 0
  %358 = vmatpush2.bf16.msra.mxu0 0
  %359 = vmatprep.mubr.bf16.mxu0 0
  %360 = vmatmul.mubr.bf16.gmra.mxu0 %v322
  %v361 = vpop.f32.mrf.mxu0
  %v362 = vadd.f32 0.0, %v361
  %v363 = vpop.f32.mrf.mxu0
  %v364 = vpop.f32.mrf.mxu0
  %v365 = vpop.f32.mrf.mxu0
  %366 = vdwg.mxu0
  %v367 = vld [vmem:[%s10] sm:$0xff]
  %v368 = vld [vmem:[%s11] sm:$0xff]
  %369 = vadd.xlane.f32.xlu0 %v362
  %v370 = vpop.xlane.xlu0 %369
  %v371 = vmul.f32 %v362, %v362
  %372 = vadd.xlane.f32.xlu0 %v371
  %v373 = vpop.xlane.xlu0 %372
  %v374 = vmul.f32 %v370, 0.0078125
  %v375 = vmul.f32 %v373, 0.0078125
  %v376 = vmul.f32 %v374, %v374
  %v377 = vsub.f32 %v375, %v376
  %v378 = vadd.f32 %v377, 1e-05
  %v379 = vrsqrt.pop %v378
  %v380 = vmul.f32 %v367, %v379
  %v381 = vmul.f32 %v374, %v380
  %v382 = vsub.f32 %v368, %v381
  %384 = vset.pattern.permute.xlu0 0
  %385 = vperm.xlu0 %384, %v380
  %v386 = vpop.permute.xlu0 %385
  %v388 = vmul.f32 %v362, %v386
  %390 = vset.pattern.permute.xlu0 0
  %391 = vperm.xlu0 %390, %v382
  %v392 = vpop.permute.xlu0 %391
  %v394 = vadd.f32 %v388, %v392
  %v395 = vadd.f32 %v317, %v394
  %396 = vst [vmem:[%s12] sm:$0xff] %v395
  // Predicated region
  $region50: #{res_block_forward.1} parent=0 // pred_check
    _
  $region51: #{res_block_forward.1} parent=0 // pred_check_branch
    %398 = sbr.rel (0) target = $region53
  $region52: #{res_block_forward.1} parent=0 // pred_region
    _
  $region53: #{res_block_forward.1} parent=0 // pred_fallthru
    _
  // Predicated region
  $region54: #{res_block_forward.1} parent=0 // pred_check
    _
  $region55: #{res_block_forward.1} parent=0 // pred_check_branch
    %400 = sbr.rel (0) target = $region57
  $region56: #{res_block_forward.1} parent=0 // pred_region
    _
  $region57: #{res_block_forward.1} parent=0 // pred_fallthru
    _

</llo_original>
